<compile_context>
chip_gen: v6e
topology: v6e:2x2x1
jax: 0.10.0
libtpu: 0.0.40
codegen_flags: <defaults>
</compile_context>

<pallas_src>
import functools
import numpy as np
import jax
import jax.numpy as jnp
from jax.experimental import pallas as pl
from jax.experimental.pallas import tpu as pltpu


# ----------------------------------------------------------------- kernel ----
def mhsa_kernel(x_ref, wqkv_ref, bqkv_ref, wo_ref, bo_ref, o_ref, *, num_heads):
    """One batch tile of multi-head self-attention.

    x_ref    : (Bt, S, D)  bf16
    wqkv_ref : (D, 3D)     bf16   (1/sqrt(hd) pre-folded into the Q columns)
    bqkv_ref : (1, 3D)     f32    (1/sqrt(hd) pre-folded into the Q part)
    wo_ref   : (D, D)      bf16
    bo_ref   : (1, D)      f32
    o_ref    : (Bt, S, D)  f32
    """
    Bt, S, D = x_ref.shape
    hd = D // num_heads

    # flatten batch*seq into the matmul M dimension (tall M for the MXU)
    x2d = x_ref[...].reshape(Bt * S, D)

    # fused QKV projection: single lane-dense matmul, f32 accumulation,
    # single broadcast bias add
    qkv = jnp.dot(x2d, wqkv_ref[...], preferred_element_type=jnp.float32)
    qkv = qkv + bqkv_ref[...]                                    # (Bt*S, 3D)

    # per-head attention (H is small; only tiny ctx slices are kept across
    # iterations, score/prob tensors are transient per head)
    ctx_heads = []
    for h in range(num_heads):                                   # static unroll
        q3 = qkv[:, h * hd:(h + 1) * hd]
        k3 = qkv[:, D + h * hd:D + (h + 1) * hd]
        v3 = qkv[:, 2 * D + h * hd:2 * D + (h + 1) * hd]
        q3 = q3.reshape(Bt, S, hd).astype(jnp.bfloat16)
        k3 = k3.reshape(Bt, S, hd).astype(jnp.bfloat16)
        v3 = v3.reshape(Bt, S, hd).astype(jnp.bfloat16)

        # scores = q @ k^T (scale already folded into Wq/bq); contraction via
        # dimension numbers -- no explicit K transpose
        s = jnp.einsum('bqd,bkd->bqk', q3, k3,
                       preferred_element_type=jnp.float32)       # (Bt, S, S)

        # numerically stable softmax over keys; stats f32, divide on the EUP
        m = jnp.max(s, axis=-1, keepdims=True)
        p = jnp.exp(s - m)
        p = p * pl.reciprocal(jnp.sum(p, axis=-1, keepdims=True), approx=True)

        ctx = jnp.einsum('bqk,bkd->bqd', p.astype(jnp.bfloat16), v3,
                         preferred_element_type=jnp.float32)     # (Bt, S, hd)
        ctx_heads.append(ctx.reshape(Bt * S, hd).astype(jnp.bfloat16))

    # lane concat (XLU) -> one K = D = 128 output projection on the MXU
    ctx_all = jnp.concatenate(ctx_heads, axis=-1)                # (Bt*S, D)
    out = jnp.dot(ctx_all, wo_ref[...], preferred_element_type=jnp.float32)
    out = out + bo_ref[...]                                      # (Bt*S, D) f32
    o_ref[...] = out.reshape(Bt, S, D)


# ------------------------------------------------------- weight preparation ----
def pack_mhsa_params(params, num_heads):
    """One-time weight reformat: fold 1/sqrt(hd) into Q, pack QKV, cast to bf16.

    Done once at load time so the per-call path pays no reformat cost.
    Params use the (din, dout) convention (y = x @ W + b).
    """
    D = params["wq"].shape[0]
    hd = D // num_heads
    scale = np.float32(1.0 / np.sqrt(hd))

    wqkv = jnp.concatenate(
        [params["wq"] * scale, params["wk"], params["wv"]], axis=1
    ).astype(jnp.bfloat16)                                       # (D, 3D)
    bqkv = jnp.concatenate(
        [params["bq"].reshape(1, D) * scale,
         params["bk"].reshape(1, D),
         params["bv"].reshape(1, D)], axis=1
    ).astype(jnp.float32)                                        # (1, 3D)
    wo = params["wo"].astype(jnp.bfloat16)                       # (D, D)
    bo = params["bo"].reshape(1, D).astype(jnp.float32)          # (1, D)
    return dict(wqkv=wqkv, bqkv=bqkv, wo=wo, bo=bo)


def _choose_block_batch(B, S, D, vmem_limit_bytes):
    # target >= ~256 matmul rows per grid step when possible ...
    bt = max(1, min(B, -(-256 // S)))
    # ... but keep >= 2 grid steps when B permits (v7x has 2 TensorCores)
    if B >= 2:
        bt = min(bt, max(1, B // 2))
    # shrink against a per-step VMEM estimate (double-buffered IO tiles +
    # f32 qkv / score / ctx intermediates); use half the scoped limit as budget
    budget = vmem_limit_bytes // 2
    while bt > 1:
        rows = bt * S
        est = 2 * rows * D * (2 + 4)          # bf16 in + f32 out tiles, 2x buf
        est += rows * 3 * D * 4               # fused qkv (f32)
        est += 2 * bt * S * S * 4             # scores + probs (f32, live head)
        est += 2 * rows * D * 4               # ctx concat + projection result
        if est <= budget:
            break
        bt -= 1
    while B % bt:
        bt -= 1
    return bt


# ---------------------------------------------------------------- wrapper ----
def multi_head_self_attention(x, packed, num_heads, *, block_batch=None,
                              vmem_limit_bytes=32 * 1024 * 1024):
    """x: (B, S, D) -> (B, S, D) f32.  mask=None; dropout = identity (eval)."""
    B, S, D = x.shape
    assert D % num_heads == 0, "hidden_size must be divisible by num_heads"

    if block_batch is None:
        block_batch = _choose_block_batch(B, S, D, vmem_limit_bytes)
    Bt = block_batch
    assert B % Bt == 0

    def _full_spec(shape):
        return pl.BlockSpec(shape, lambda i: (0,) * len(shape))

    kernel = functools.partial(mhsa_kernel, num_heads=num_heads)
    return pl.pallas_call(
        kernel,
        out_shape=jax.ShapeDtypeStruct((B, S, D), jnp.float32),
        grid=(B // Bt,),
        in_specs=[
            pl.BlockSpec((Bt, S, D), lambda i: (i, 0, 0)),       # x (bf16)
            _full_spec(packed["wqkv"].shape),                    # (D, 3D) bf16
            _full_spec(packed["bqkv"].shape),                    # (1, 3D) f32
            _full_spec(packed["wo"].shape),                      # (D, D)  bf16
            _full_spec(packed["bo"].shape),                      # (1, D)  f32
        ],
        out_specs=pl.BlockSpec((Bt, S, D), lambda i: (i, 0, 0)),
        compiler_params=pltpu.CompilerParams(
            dimension_semantics=("parallel",),
            vmem_limit_bytes=vmem_limit_bytes),
    )(x.astype(jnp.bfloat16), packed["wqkv"], packed["bqkv"],
      packed["wo"], packed["bo"])


# ------------------------------------------------------ pure-JAX reference ----
def mhsa_reference(x, params, num_heads):
    B, S, D = x.shape
    hd = D // num_heads
    q = x @ params["wq"] + params["bq"]
    k = x @ params["wk"] + params["bk"]
    v = x @ params["wv"] + params["bv"]

    def split(t):
        return t.reshape(B, S, num_heads, hd).transpose(0, 2, 1, 3)  # (B,H,S,hd)

    qh, kh, vh = split(q), split(k), split(v)
    s = jnp.einsum("bhqd,bhkd->bhqk", qh, kh) / np.sqrt(hd)
    p = jax.nn.softmax(s, axis=-1)
    ctx = jnp.einsum("bhqk,bhkd->bhqd", p, vh)
    ctx = ctx.transpose(0, 2, 1, 3).reshape(B, S, D)
    return ctx @ params["wo"] + params["bo"]


# ------------------------------------------------------------------- main ----
if __name__ == "__main__":
    B, S = 2, 16
    hidden_size, num_heads = 128, 4

    key = jax.random.PRNGKey(0)
    kx, kq, kk, kv, ko = jax.random.split(key, 5)

    def dense(k, din, dout):
        kw, kb = jax.random.split(k)
        w = jax.random.normal(kw, (din, dout), jnp.float32) * 0.05
        b = jax.random.normal(kb, (1, dout), jnp.float32) * 0.05
        return w, b

    wq, bq = dense(kq, hidden_size, hidden_size)
    wk, bk = dense(kk, hidden_size, hidden_size)
    wv, bv = dense(kv, hidden_size, hidden_size)
    wo, bo = dense(ko, hidden_size, hidden_size)
    params = dict(wq=wq, bq=bq, wk=wk, bk=bk, wv=wv, bv=bv, wo=wo, bo=bo)

    # PyTorch input layout: (batch, seq_len, hidden_size)
    x = jax.random.normal(kx, (B, S, hidden_size), jnp.float32)

    # one-time weight packing; per-call path is the jitted kernel only
    packed = pack_mhsa_params(params, num_heads)
    fwd = jax.jit(functools.partial(multi_head_self_attention,
                                    num_heads=num_heads))

    out = fwd(x, packed)
    out = jax.block_until_ready(out)

    assert out.shape == (B, S, hidden_size)
    assert bool(jnp.all(jnp.isfinite(out)))

    ref = mhsa_reference(x, params, num_heads)
    max_err = float(jnp.max(jnp.abs(out - ref)))
    assert max_err < 5e-2, f"max abs err {max_err}"  # bf16-operand tolerance

    print("KERNEL_OK")
</pallas_src>

<mosaic_0001>
module attributes {stable_mosaic.version = 11 : i64} {
  func.func @mhsa_kernel(%arg0: i32, %arg1: memref<1x16x128xbf16, #tpu.memory_space<vmem>>, %arg2: memref<128x384xbf16, #tpu.memory_space<vmem>>, %arg3: memref<1x384xf32, #tpu.memory_space<vmem>>, %arg4: memref<128x128xbf16, #tpu.memory_space<vmem>>, %arg5: memref<1x128xf32, #tpu.memory_space<vmem>>, %arg6: memref<1x16x128xf32, #tpu.memory_space<vmem>>) attributes {dimension_semantics = [#tpu.dimension_semantics<parallel>], iteration_bounds = array<i64: 2>, scalar_prefetch = 0 : i64, scratch_operands = 0 : i64, tpu.core_type = #tpu.core_type<tc>, window_params = [{transform_indices = @transform_0, window_bounds = array<i64: 1, 16, 128>}, {pipeline_mode = #tpu.pipeline_mode<synchronous>, transform_indices = @transform_1, window_bounds = array<i64: 128, 384>}, {pipeline_mode = #tpu.pipeline_mode<synchronous>, transform_indices = @transform_2, window_bounds = array<i64: 1, 384>}, {pipeline_mode = #tpu.pipeline_mode<synchronous>, transform_indices = @transform_3, window_bounds = array<i64: 128, 128>}, {pipeline_mode = #tpu.pipeline_mode<synchronous>, transform_indices = @transform_4, window_bounds = array<i64: 1, 128>}, {transform_indices = @transform_5, window_bounds = array<i64: 1, 16, 128>}]} {
    %c0 = arith.constant 0 : index
    %c0_0 = arith.constant 0 : index
    %c0_1 = arith.constant 0 : index
    %0 = vector.load %arg1[%c0, %c0_0, %c0_1] : memref<1x16x128xbf16, #tpu.memory_space<vmem>>, vector<1x16x128xbf16>
    %1 = vector.shape_cast %0 : vector<1x16x128xbf16> to vector<16x128xbf16>
    %c0_2 = arith.constant 0 : index
    %c0_3 = arith.constant 0 : index
    %2 = vector.load %arg2[%c0_2, %c0_3] : memref<128x384xbf16, #tpu.memory_space<vmem>>, vector<128x384xbf16>
    %cst = arith.constant dense<0.000000e+00> : vector<16x384xf32>
    %3 = tpu.matmul %1, %2, %cst {dimension_numbers = #tpu.dot_dimension_numbers<[1], [0], [0], [1], [0, 0, 1, 1], [], []>} : vector<16x128xbf16>, vector<128x384xbf16>, vector<16x384xf32> -> vector<16x384xf32>
    %c0_4 = arith.constant 0 : index
    %c0_5 = arith.constant 0 : index
    %4 = vector.load %arg3[%c0_4, %c0_5] : memref<1x384xf32, #tpu.memory_space<vmem>>, vector<1x384xf32>
    %5 = vector.broadcast %4 : vector<1x384xf32> to vector<16x384xf32>
    %6 = arith.addf %3, %5 : vector<16x384xf32>
    %7 = vector.extract_strided_slice %6 {offsets = [0, 0], sizes = [16, 32], strides = [1, 1]} : vector<16x384xf32> to vector<16x32xf32>
    %8 = vector.extract_strided_slice %6 {offsets = [0, 128], sizes = [16, 32], strides = [1, 1]} : vector<16x384xf32> to vector<16x32xf32>
    %9 = vector.extract_strided_slice %6 {offsets = [0, 256], sizes = [16, 32], strides = [1, 1]} : vector<16x384xf32> to vector<16x32xf32>
    %10 = vector.shape_cast %7 : vector<16x32xf32> to vector<1x16x32xf32>
    %11 = arith.truncf %10 : vector<1x16x32xf32> to vector<1x16x32xbf16>
    %12 = vector.shape_cast %8 : vector<16x32xf32> to vector<1x16x32xf32>
    %13 = arith.truncf %12 : vector<1x16x32xf32> to vector<1x16x32xbf16>
    %14 = vector.shape_cast %9 : vector<16x32xf32> to vector<1x16x32xf32>
    %15 = arith.truncf %14 : vector<1x16x32xf32> to vector<1x16x32xbf16>
    "tpu.trace_start"() <{level = 10 : i32, message = "bqd,bkd->bqk"}> : () -> ()
    %cst_6 = arith.constant dense<0.000000e+00> : vector<1x16x16xf32>
    %16 = tpu.matmul %11, %13, %cst_6 {dimension_numbers = #tpu.dot_dimension_numbers<[2], [2], [1], [1], [0, 0, 0, 1, 1, 1], [0], [0]>} : vector<1x16x32xbf16>, vector<1x16x32xbf16>, vector<1x16x16xf32> -> vector<1x16x16xf32>
    "tpu.trace_stop"() : () -> ()
    %cst_7 = arith.constant dense<0xFF800000> : vector<1x16xf32>
    %17 = vector.multi_reduction <maximumf>, %16, %cst_7 [2] : vector<1x16x16xf32> to vector<1x16xf32>
    %18 = vector.shape_cast %17 : vector<1x16xf32> to vector<1x16x1xf32>
    %19 = vector.broadcast %18 : vector<1x16x1xf32> to vector<1x16x16xf32>
    %20 = arith.subf %16, %19 : vector<1x16x16xf32>
    %21 = math.exp %20 : vector<1x16x16xf32>
    %cst_8 = arith.constant dense<0.000000e+00> : vector<1x16xf32>
    %22 = vector.multi_reduction <add>, %21, %cst_8 [2] : vector<1x16x16xf32> to vector<1x16xf32>
    %23 = vector.shape_cast %22 : vector<1x16xf32> to vector<1x16x1xf32>
    %24 = tpu.reciprocal %23 {approx = true} : vector<1x16x1xf32> -> vector<1x16x1xf32>
    %25 = vector.broadcast %24 : vector<1x16x1xf32> to vector<1x16x16xf32>
    %26 = arith.mulf %21, %25 : vector<1x16x16xf32>
    %27 = arith.truncf %26 : vector<1x16x16xf32> to vector<1x16x16xbf16>
    "tpu.trace_start"() <{level = 10 : i32, message = "bqk,bkd->bqd"}> : () -> ()
    %cst_9 = arith.constant dense<0.000000e+00> : vector<1x16x32xf32>
    %28 = tpu.matmul %27, %15, %cst_9 {dimension_numbers = #tpu.dot_dimension_numbers<[2], [1], [1], [2], [0, 0, 0, 1, 1, 2], [0], [0]>} : vector<1x16x16xbf16>, vector<1x16x32xbf16>, vector<1x16x32xf32> -> vector<1x16x32xf32>
    "tpu.trace_stop"() : () -> ()
    %29 = vector.shape_cast %28 : vector<1x16x32xf32> to vector<16x32xf32>
    %30 = arith.truncf %29 : vector<16x32xf32> to vector<16x32xbf16>
    %31 = vector.extract_strided_slice %6 {offsets = [0, 32], sizes = [16, 32], strides = [1, 1]} : vector<16x384xf32> to vector<16x32xf32>
    %32 = vector.extract_strided_slice %6 {offsets = [0, 160], sizes = [16, 32], strides = [1, 1]} : vector<16x384xf32> to vector<16x32xf32>
    %33 = vector.extract_strided_slice %6 {offsets = [0, 288], sizes = [16, 32], strides = [1, 1]} : vector<16x384xf32> to vector<16x32xf32>
    %34 = vector.shape_cast %31 : vector<16x32xf32> to vector<1x16x32xf32>
    %35 = arith.truncf %34 : vector<1x16x32xf32> to vector<1x16x32xbf16>
    %36 = vector.shape_cast %32 : vector<16x32xf32> to vector<1x16x32xf32>
    %37 = arith.truncf %36 : vector<1x16x32xf32> to vector<1x16x32xbf16>
    %38 = vector.shape_cast %33 : vector<16x32xf32> to vector<1x16x32xf32>
    %39 = arith.truncf %38 : vector<1x16x32xf32> to vector<1x16x32xbf16>
    "tpu.trace_start"() <{level = 10 : i32, message = "bqd,bkd->bqk"}> : () -> ()
    %cst_10 = arith.constant dense<0.000000e+00> : vector<1x16x16xf32>
    %40 = tpu.matmul %35, %37, %cst_10 {dimension_numbers = #tpu.dot_dimension_numbers<[2], [2], [1], [1], [0, 0, 0, 1, 1, 1], [0], [0]>} : vector<1x16x32xbf16>, vector<1x16x32xbf16>, vector<1x16x16xf32> -> vector<1x16x16xf32>
    "tpu.trace_stop"() : () -> ()
    %cst_11 = arith.constant dense<0xFF800000> : vector<1x16xf32>
    %41 = vector.multi_reduction <maximumf>, %40, %cst_11 [2] : vector<1x16x16xf32> to vector<1x16xf32>
    %42 = vector.shape_cast %41 : vector<1x16xf32> to vector<1x16x1xf32>
    %43 = vector.broadcast %42 : vector<1x16x1xf32> to vector<1x16x16xf32>
    %44 = arith.subf %40, %43 : vector<1x16x16xf32>
    %45 = math.exp %44 : vector<1x16x16xf32>
    %cst_12 = arith.constant dense<0.000000e+00> : vector<1x16xf32>
    %46 = vector.multi_reduction <add>, %45, %cst_12 [2] : vector<1x16x16xf32> to vector<1x16xf32>
    %47 = vector.shape_cast %46 : vector<1x16xf32> to vector<1x16x1xf32>
    %48 = tpu.reciprocal %47 {approx = true} : vector<1x16x1xf32> -> vector<1x16x1xf32>
    %49 = vector.broadcast %48 : vector<1x16x1xf32> to vector<1x16x16xf32>
    %50 = arith.mulf %45, %49 : vector<1x16x16xf32>
    %51 = arith.truncf %50 : vector<1x16x16xf32> to vector<1x16x16xbf16>
    "tpu.trace_start"() <{level = 10 : i32, message = "bqk,bkd->bqd"}> : () -> ()
    %cst_13 = arith.constant dense<0.000000e+00> : vector<1x16x32xf32>
    %52 = tpu.matmul %51, %39, %cst_13 {dimension_numbers = #tpu.dot_dimension_numbers<[2], [1], [1], [2], [0, 0, 0, 1, 1, 2], [0], [0]>} : vector<1x16x16xbf16>, vector<1x16x32xbf16>, vector<1x16x32xf32> -> vector<1x16x32xf32>
    "tpu.trace_stop"() : () -> ()
    %53 = vector.shape_cast %52 : vector<1x16x32xf32> to vector<16x32xf32>
    %54 = arith.truncf %53 : vector<16x32xf32> to vector<16x32xbf16>
    %55 = vector.extract_strided_slice %6 {offsets = [0, 64], sizes = [16, 32], strides = [1, 1]} : vector<16x384xf32> to vector<16x32xf32>
    %56 = vector.extract_strided_slice %6 {offsets = [0, 192], sizes = [16, 32], strides = [1, 1]} : vector<16x384xf32> to vector<16x32xf32>
    %57 = vector.extract_strided_slice %6 {offsets = [0, 320], sizes = [16, 32], strides = [1, 1]} : vector<16x384xf32> to vector<16x32xf32>
    %58 = vector.shape_cast %55 : vector<16x32xf32> to vector<1x16x32xf32>
    %59 = arith.truncf %58 : vector<1x16x32xf32> to vector<1x16x32xbf16>
    %60 = vector.shape_cast %56 : vector<16x32xf32> to vector<1x16x32xf32>
    %61 = arith.truncf %60 : vector<1x16x32xf32> to vector<1x16x32xbf16>
    %62 = vector.shape_cast %57 : vector<16x32xf32> to vector<1x16x32xf32>
    %63 = arith.truncf %62 : vector<1x16x32xf32> to vector<1x16x32xbf16>
    "tpu.trace_start"() <{level = 10 : i32, message = "bqd,bkd->bqk"}> : () -> ()
    %cst_14 = arith.constant dense<0.000000e+00> : vector<1x16x16xf32>
    %64 = tpu.matmul %59, %61, %cst_14 {dimension_numbers = #tpu.dot_dimension_numbers<[2], [2], [1], [1], [0, 0, 0, 1, 1, 1], [0], [0]>} : vector<1x16x32xbf16>, vector<1x16x32xbf16>, vector<1x16x16xf32> -> vector<1x16x16xf32>
    "tpu.trace_stop"() : () -> ()
    %cst_15 = arith.constant dense<0xFF800000> : vector<1x16xf32>
    %65 = vector.multi_reduction <maximumf>, %64, %cst_15 [2] : vector<1x16x16xf32> to vector<1x16xf32>
    %66 = vector.shape_cast %65 : vector<1x16xf32> to vector<1x16x1xf32>
    %67 = vector.broadcast %66 : vector<1x16x1xf32> to vector<1x16x16xf32>
    %68 = arith.subf %64, %67 : vector<1x16x16xf32>
    %69 = math.exp %68 : vector<1x16x16xf32>
    %cst_16 = arith.constant dense<0.000000e+00> : vector<1x16xf32>
    %70 = vector.multi_reduction <add>, %69, %cst_16 [2] : vector<1x16x16xf32> to vector<1x16xf32>
    %71 = vector.shape_cast %70 : vector<1x16xf32> to vector<1x16x1xf32>
    %72 = tpu.reciprocal %71 {approx = true} : vector<1x16x1xf32> -> vector<1x16x1xf32>
    %73 = vector.broadcast %72 : vector<1x16x1xf32> to vector<1x16x16xf32>
    %74 = arith.mulf %69, %73 : vector<1x16x16xf32>
    %75 = arith.truncf %74 : vector<1x16x16xf32> to vector<1x16x16xbf16>
    "tpu.trace_start"() <{level = 10 : i32, message = "bqk,bkd->bqd"}> : () -> ()
    %cst_17 = arith.constant dense<0.000000e+00> : vector<1x16x32xf32>
    %76 = tpu.matmul %75, %63, %cst_17 {dimension_numbers = #tpu.dot_dimension_numbers<[2], [1], [1], [2], [0, 0, 0, 1, 1, 2], [0], [0]>} : vector<1x16x16xbf16>, vector<1x16x32xbf16>, vector<1x16x32xf32> -> vector<1x16x32xf32>
    "tpu.trace_stop"() : () -> ()
    %77 = vector.shape_cast %76 : vector<1x16x32xf32> to vector<16x32xf32>
    %78 = arith.truncf %77 : vector<16x32xf32> to vector<16x32xbf16>
    %79 = vector.extract_strided_slice %6 {offsets = [0, 96], sizes = [16, 32], strides = [1, 1]} : vector<16x384xf32> to vector<16x32xf32>
    %80 = vector.extract_strided_slice %6 {offsets = [0, 224], sizes = [16, 32], strides = [1, 1]} : vector<16x384xf32> to vector<16x32xf32>
    %81 = vector.extract_strided_slice %6 {offsets = [0, 352], sizes = [16, 32], strides = [1, 1]} : vector<16x384xf32> to vector<16x32xf32>
    %82 = vector.shape_cast %79 : vector<16x32xf32> to vector<1x16x32xf32>
    %83 = arith.truncf %82 : vector<1x16x32xf32> to vector<1x16x32xbf16>
    %84 = vector.shape_cast %80 : vector<16x32xf32> to vector<1x16x32xf32>
    %85 = arith.truncf %84 : vector<1x16x32xf32> to vector<1x16x32xbf16>
    %86 = vector.shape_cast %81 : vector<16x32xf32> to vector<1x16x32xf32>
    %87 = arith.truncf %86 : vector<1x16x32xf32> to vector<1x16x32xbf16>
    "tpu.trace_start"() <{level = 10 : i32, message = "bqd,bkd->bqk"}> : () -> ()
    %cst_18 = arith.constant dense<0.000000e+00> : vector<1x16x16xf32>
    %88 = tpu.matmul %83, %85, %cst_18 {dimension_numbers = #tpu.dot_dimension_numbers<[2], [2], [1], [1], [0, 0, 0, 1, 1, 1], [0], [0]>} : vector<1x16x32xbf16>, vector<1x16x32xbf16>, vector<1x16x16xf32> -> vector<1x16x16xf32>
    "tpu.trace_stop"() : () -> ()
    %cst_19 = arith.constant dense<0xFF800000> : vector<1x16xf32>
    %89 = vector.multi_reduction <maximumf>, %88, %cst_19 [2] : vector<1x16x16xf32> to vector<1x16xf32>
    %90 = vector.shape_cast %89 : vector<1x16xf32> to vector<1x16x1xf32>
    %91 = vector.broadcast %90 : vector<1x16x1xf32> to vector<1x16x16xf32>
    %92 = arith.subf %88, %91 : vector<1x16x16xf32>
    %93 = math.exp %92 : vector<1x16x16xf32>
    %cst_20 = arith.constant dense<0.000000e+00> : vector<1x16xf32>
    %94 = vector.multi_reduction <add>, %93, %cst_20 [2] : vector<1x16x16xf32> to vector<1x16xf32>
    %95 = vector.shape_cast %94 : vector<1x16xf32> to vector<1x16x1xf32>
    %96 = tpu.reciprocal %95 {approx = true} : vector<1x16x1xf32> -> vector<1x16x1xf32>
    %97 = vector.broadcast %96 : vector<1x16x1xf32> to vector<1x16x16xf32>
    %98 = arith.mulf %93, %97 : vector<1x16x16xf32>
    %99 = arith.truncf %98 : vector<1x16x16xf32> to vector<1x16x16xbf16>
    "tpu.trace_start"() <{level = 10 : i32, message = "bqk,bkd->bqd"}> : () -> ()
    %cst_21 = arith.constant dense<0.000000e+00> : vector<1x16x32xf32>
    %100 = tpu.matmul %99, %87, %cst_21 {dimension_numbers = #tpu.dot_dimension_numbers<[2], [1], [1], [2], [0, 0, 0, 1, 1, 2], [0], [0]>} : vector<1x16x16xbf16>, vector<1x16x32xbf16>, vector<1x16x32xf32> -> vector<1x16x32xf32>
    "tpu.trace_stop"() : () -> ()
    %101 = vector.shape_cast %100 : vector<1x16x32xf32> to vector<16x32xf32>
    %102 = arith.truncf %101 : vector<16x32xf32> to vector<16x32xbf16>
    %103 = tpu.concatenate %30, %54, %78, %102 in 1 : vector<16x32xbf16>, vector<16x32xbf16>, vector<16x32xbf16>, vector<16x32xbf16> -> vector<16x128xbf16>
    %c0_22 = arith.constant 0 : index
    %c0_23 = arith.constant 0 : index
    %104 = vector.load %arg4[%c0_22, %c0_23] : memref<128x128xbf16, #tpu.memory_space<vmem>>, vector<128x128xbf16>
    %cst_24 = arith.constant dense<0.000000e+00> : vector<16x128xf32>
    %105 = tpu.matmul %103, %104, %cst_24 {dimension_numbers = #tpu.dot_dimension_numbers<[1], [0], [0], [1], [0, 0, 1, 1], [], []>} : vector<16x128xbf16>, vector<128x128xbf16>, vector<16x128xf32> -> vector<16x128xf32>
    %c0_25 = arith.constant 0 : index
    %c0_26 = arith.constant 0 : index
    %106 = vector.load %arg5[%c0_25, %c0_26] : memref<1x128xf32, #tpu.memory_space<vmem>>, vector<1x128xf32>
    %107 = vector.broadcast %106 : vector<1x128xf32> to vector<16x128xf32>
    %108 = arith.addf %105, %107 : vector<16x128xf32>
    %109 = vector.shape_cast %108 : vector<16x128xf32> to vector<1x16x128xf32>
    %c0_27 = arith.constant 0 : index
    %c0_28 = arith.constant 0 : index
    %c0_29 = arith.constant 0 : index
    %110 = vector.load %arg6[%c0_27, %c0_28, %c0_29] : memref<1x16x128xf32, #tpu.memory_space<vmem>>, vector<1x16x128xf32>
    tpu.vector_store %arg6[%c0_27, %c0_28, %c0_29], %109 {strides = array<i32>} : memref<1x16x128xf32, #tpu.memory_space<vmem>>, vector<1x16x128xf32>,
    return
  }
  func.func @transform_0(%arg0: i32) -> (i32, i32, i32) {
    %c0_i32 = arith.constant 0 : i32
    %c0_i32_0 = arith.constant 0 : i32
    %c0_i32_1 = arith.constant 0 : i32
    return %arg0, %c0_i32, %c0_i32_0 : i32, i32, i32
  }
  func.func @transform_1(%arg0: i32) -> (i32, i32) {
    %c0_i32 = arith.constant 0 : i32
    %c0_i32_0 = arith.constant 0 : i32
    %c0_i32_1 = arith.constant 0 : i32
    return %c0_i32, %c0_i32_0 : i32, i32
  }
  func.func @transform_2(%arg0: i32) -> (i32, i32) {
    %c0_i32 = arith.constant 0 : i32
    %c0_i32_0 = arith.constant 0 : i32
    %c0_i32_1 = arith.constant 0 : i32
    return %c0_i32, %c0_i32_0 : i32, i32
  }
  func.func @transform_3(%arg0: i32) -> (i32, i32) {
    %c0_i32 = arith.constant 0 : i32
    %c0_i32_0 = arith.constant 0 : i32
    %c0_i32_1 = arith.constant 0 : i32
    return %c0_i32, %c0_i32_0 : i32, i32
  }
  func.func @transform_4(%arg0: i32) -> (i32, i32) {
    %c0_i32 = arith.constant 0 : i32
    %c0_i32_0 = arith.constant 0 : i32
    %c0_i32_1 = arith.constant 0 : i32
    return %c0_i32, %c0_i32_0 : i32, i32
  }
  func.func @transform_5(%arg0: i32) -> (i32, i32, i32) {
    %c0_i32 = arith.constant 0 : i32
    %c0_i32_0 = arith.constant 0 : i32
    %c0_i32_1 = arith.constant 0 : i32
    return %arg0, %c0_i32, %c0_i32_0 : i32, i32, i32
  }
}

</mosaic_0001>

<llo_original>
// kernel: multi_head_self_attention.1
$region0: #{multi_head_self_attention.1}
  #allocation0 [shape = 'u32[]', space=smem, size = 0x4, offset = 0x4, fixed_abs, tag = 'smem constant byte address 0x4 - core index']
  #allocation1 [shape = 'u32[144,128]{1,0:T(1,128)}', space=vmem, size = 0x12000, scoped, tag = 'internal scratch']
  %s0 = inlined_call_operand.vmem [shape: bf16[2,16,128], index: 0, kind: input, shape index: {}]
  %s1 = inlined_call_operand.hbm [shape: bf16[128,384], index: 1, kind: input, shape index: {}]
  %s2 = inlined_call_operand.vmem [shape: f32[1,384], index: 2, kind: input, shape index: {}]
  %s3 = inlined_call_operand.hbm [shape: bf16[128,128], index: 3, kind: input, shape index: {}]
  %s4 = inlined_call_operand.vmem [shape: f32[1,128], index: 4, kind: input, shape index: {}]
  %s5 = inlined_call_operand.hbm [shape: f32[2,16,128], index: 5, kind: output, shape index: {}]
  %s6 = sld [smem:[#allocation0]]
  $region61: #{multi_head_self_attention.1} parent=0
    _
  %s8 = ssub.s32 1, %s6
  %s9 = scalar_select 0, %s8, %s6
  $region1: #{multi_head_self_attention.1} parent=0
    #allocation2 [shape = 'u8[98304]{0}', space=vmem, size = 0x18000, scoped, tag = 'input window, operand 1, single buffered']
    #allocation3 [shape = 's32[2]{0}', space=sflag, size = 0x8, scoped, tag = 'scoped memory for multi_head_self_attention.1']
    #allocation4 [shape = 's32[2]{0}', space=sflag, size = 0x8, scoped, tag = 'scoped memory for multi_head_self_attention.1']
    #allocation5 [shape = 'u8[32768]{0}', space=vmem, size = 0x8000, scoped, tag = 'input window, operand 3, single buffered']
    #allocation6 [shape = 's32[1]{0}', space=sflag, size = 0x4, scoped, tag = 'scoped memory for multi_head_self_attention.1']
    #allocation7 [shape = 'u8[16384]{0}', space=vmem, size = 0x4000, scoped, tag = 'output window, operand 0']
    %10 = vsyncpa [#allocation3], 0
    %11 = vsyncpa [#allocation6], 0
    %12 = vsyncpa [#allocation4], 0
    %s13 = scalar_lea.sflag [#allocation4], 1
    %14 = vsyncpa %s13, 0
    loop: start=0, step=1, limit=4
    $region2: #{multi_head_self_attention.1} parent=1 // loop_pre_header
      _
    $region3: #{multi_head_self_attention.1} parent=1 // loop_header
      %s16 = sphi 0, %s20
      %p17 = scmp.ge.s32.totalorder %s16, 4
      %s26 = sphi 0, %s28
      %s29 = sphi 0, %s26
      %s30 = sphi 0, %s29
      %s46 = sphi 0, %s30
      %s50 = sphi 0, %s50
      %s52 = sphi 0, %s50
      %s53 = sphi 0, %s52
      %s67 = sphi 0, %s53
      %s71 = sphi 0, %s71
      %s73 = sphi 0, %s71
      %s74 = sphi 0, %s73
      %s88 = sphi 0, %s74
      %s92 = sphi 0, %s92
      %s94 = sphi 0, %s92
      %s95 = sphi 0, %s94
      %s109 = sphi 0, %s95
      %s113 = sphi 0, %s113
      %s115 = sphi 0, %s113
      %s116 = sphi 0, %s115
      %s130 = sphi 0, %s116
      %s136 = sphi 0, %s138
      %s139 = sphi 0, %s136
      %s140 = sphi 0, %s139
      %s156 = sphi 0, %s140
    $region4: #{multi_head_self_attention.1} parent=1 // loop_header_branch
      %19 = sbr.rel (%p17) target = $region8
    $region5: #{multi_head_self_attention.1} parent=1 // loop_body
      %s21 = ssub.s32 %s16, 1
      %s22 = ssub.s32 %s16, 2
      %s23 = sadd.s32 %s16, 1
      %s24 = ssub.s32 %s16, %s23
      %p25 = scmp.eq.s32.totalorder %s24, 0
      %s27 = sadd.s32 %s26, 1
      %s28 = scalar_select %p25, %s26, %s27
      %p31 = pneg %p25
      %p32 = scmp.eq.s32.totalorder %s16, 1
      %p33 = por %p31, %p32
      %p34 = scmp.ne.s32.totalorder %s26, %s29
      %p35 = scmp.eq.s32.totalorder %s16, 0
      %p36 = por %p34, %p35
      %p37 = scmp.ne.s32.totalorder %s26, %s29
      %p38 = scmp.eq.s32.totalorder %s21, 1
      %p39 = por %p37, %p38
      %p40 = scmp.ne.s32.totalorder %s29, %s30
      %p41 = scmp.eq.s32.totalorder %s21, 0
      %p42 = por %p40, %p41
      %p43 = scmp.ne.s32.totalorder %s29, %s30
      %p44 = scmp.eq.s32.totalorder %s22, 1
      %p45 = por %p43, %p44
      %p47 = scmp.ne.s32.totalorder %s30, %s46
      %p48 = scmp.eq.s32.totalorder %s22, 0
      %p49 = por %p47, %p48
      %s51 = sadd.s32 %s50, 1
      %p54 = scmp.eq.s32.totalorder %s16, 1
      %p55 = scmp.ne.s32.totalorder %s50, %s52
      %p56 = scmp.eq.s32.totalorder %s16, 0
      %p57 = por %p55, %p56
      %p58 = scmp.ne.s32.totalorder %s50, %s52
      %p59 = scmp.eq.s32.totalorder %s21, 1
      %p60 = por %p58, %p59
      %p61 = scmp.ne.s32.totalorder %s52, %s53
      %p62 = scmp.eq.s32.totalorder %s21, 0
      %p63 = por %p61, %p62
      %p64 = scmp.ne.s32.totalorder %s52, %s53
      %p65 = scmp.eq.s32.totalorder %s22, 1
      %p66 = por %p64, %p65
      %p68 = scmp.ne.s32.totalorder %s53, %s67
      %p69 = scmp.eq.s32.totalorder %s22, 0
      %p70 = por %p68, %p69
      %s72 = sadd.s32 %s71, 1
      %p75 = scmp.eq.s32.totalorder %s16, 1
      %p76 = scmp.ne.s32.totalorder %s71, %s73
      %p77 = scmp.eq.s32.totalorder %s16, 0
      %p78 = por %p76, %p77
      %p79 = scmp.ne.s32.totalorder %s71, %s73
      %p80 = scmp.eq.s32.totalorder %s21, 1
      %p81 = por %p79, %p80
      %p82 = scmp.ne.s32.totalorder %s73, %s74
      %p83 = scmp.eq.s32.totalorder %s21, 0
      %p84 = por %p82, %p83
      %p85 = scmp.ne.s32.totalorder %s73, %s74
      %p86 = scmp.eq.s32.totalorder %s22, 1
      %p87 = por %p85, %p86
      %p89 = scmp.ne.s32.totalorder %s74, %s88
      %p90 = scmp.eq.s32.totalorder %s22, 0
      %p91 = por %p89, %p90
      %s93 = sadd.s32 %s92, 1
      %p96 = scmp.eq.s32.totalorder %s16, 1
      %p97 = scmp.ne.s32.totalorder %s92, %s94
      %p98 = scmp.eq.s32.totalorder %s16, 0
      %p99 = por %p97, %p98
      %p100 = scmp.ne.s32.totalorder %s92, %s94
      %p101 = scmp.eq.s32.totalorder %s21, 1
      %p102 = por %p100, %p101
      %p103 = scmp.ne.s32.totalorder %s94, %s95
      %p104 = scmp.eq.s32.totalorder %s21, 0
      %p105 = por %p103, %p104
      %p106 = scmp.ne.s32.totalorder %s94, %s95
      %p107 = scmp.eq.s32.totalorder %s22, 1
      %p108 = por %p106, %p107
      %p110 = scmp.ne.s32.totalorder %s95, %s109
      %p111 = scmp.eq.s32.totalorder %s22, 0
      %p112 = por %p110, %p111
      %s114 = sadd.s32 %s113, 1
      %p117 = scmp.eq.s32.totalorder %s16, 1
      %p118 = scmp.ne.s32.totalorder %s113, %s115
      %p119 = scmp.eq.s32.totalorder %s16, 0
      %p120 = por %p118, %p119
      %p121 = scmp.ne.s32.totalorder %s113, %s115
      %p122 = scmp.eq.s32.totalorder %s21, 1
      %p123 = por %p121, %p122
      %p124 = scmp.ne.s32.totalorder %s115, %s116
      %p125 = scmp.eq.s32.totalorder %s21, 0
      %p126 = por %p124, %p125
      %p127 = scmp.ne.s32.totalorder %s115, %s116
      %p128 = scmp.eq.s32.totalorder %s22, 1
      %p129 = por %p127, %p128
      %p131 = scmp.ne.s32.totalorder %s116, %s130
      %p132 = scmp.eq.s32.totalorder %s22, 0
      %p133 = por %p131, %p132
      %s134 = ssub.s32 %s16, %s23
      %p135 = scmp.eq.s32.totalorder %s134, 0
      %s137 = sadd.s32 %s136, 1
      %s138 = scalar_select %p135, %s136, %s137
      %p141 = pneg %p135
      %p142 = scmp.eq.s32.totalorder %s16, 1
      %p143 = por %p141, %p142
      %p144 = scmp.ne.s32.totalorder %s136, %s139
      %p145 = scmp.eq.s32.totalorder %s16, 0
      %p146 = por %p144, %p145
      %p147 = scmp.ne.s32.totalorder %s136, %s139
      %p148 = scmp.eq.s32.totalorder %s21, 1
      %p149 = por %p147, %p148
      %p150 = scmp.ne.s32.totalorder %s139, %s140
      %p151 = scmp.eq.s32.totalorder %s21, 0
      %p152 = por %p150, %p151
      %p153 = scmp.ne.s32.totalorder %s139, %s140
      %p154 = scmp.eq.s32.totalorder %s22, 1
      %p155 = por %p153, %p154
      %p157 = scmp.ne.s32.totalorder %s140, %s156
      %p158 = scmp.eq.s32.totalorder %s22, 0
      %p159 = por %p157, %p158
      %p160 = scmp.le.s32.totalorder 1, %s16
      %p161 = scmp.lt.s32.totalorder %s16, 3
      %p162 = pnand %p160, %p161
      %p163 = pneg %p162
      // Predicated region
      $region9: #{multi_head_self_attention.1} parent=5 // pred_check
        _
      $region10: #{multi_head_self_attention.1} parent=5 // pred_check_branch
        %165 = sbr.rel (%p162) target = $region12
      $region11: #{multi_head_self_attention.1} parent=5 // pred_region
        %s166 = ssub.s32 %s16, 1
        // Predicated region
        $region13: #{multi_head_self_attention.1} parent=11 // pred_check
          %p167 = pneg %p63
        $region14: #{multi_head_self_attention.1} parent=11 // pred_check_branch
          %169 = sbr.rel (%p167) target = $region16
        $region15: #{multi_head_self_attention.1} parent=11 // pred_region
          %s171 = ssub.s32 3072, 3072
          %172 = vsyncadd [#allocation3], %s171
          %s173 = sshll.u32 [#allocation2], 4
          %s174 = int_to_ptr.vmem [resolvable:$true] %s173
          %179 = dma.hbm_to_vmem [thread:$0]  %s1, 3072, %s174, [#allocation3], 192, 192, 12
        $region16: #{multi_head_self_attention.1} parent=11 // pred_fallthru
          _
        // Predicated region
        $region17: #{multi_head_self_attention.1} parent=11 // pred_check
          %p180 = pneg %p84
        $region18: #{multi_head_self_attention.1} parent=11 // pred_check_branch
          %182 = sbr.rel (%p180) target = $region20
        $region19: #{multi_head_self_attention.1} parent=11 // pred_region
          _
        $region20: #{multi_head_self_attention.1} parent=11 // pred_fallthru
          _
        // Predicated region
        $region21: #{multi_head_self_attention.1} parent=11 // pred_check
          %p183 = pneg %p105
        $region22: #{multi_head_self_attention.1} parent=11 // pred_check_branch
          %185 = sbr.rel (%p183) target = $region24
        $region23: #{multi_head_self_attention.1} parent=11 // pred_region
          %s187 = ssub.s32 1024, 1024
          %188 = vsyncadd [#allocation6], %s187
          %s189 = sshll.u32 [#allocation5], 4
          %s190 = int_to_ptr.vmem [resolvable:$true] %s189
          %195 = dma.hbm_to_vmem [thread:$0]  %s3, 1024, %s190, [#allocation6], 64, 64, 4
        $region24: #{multi_head_self_attention.1} parent=11 // pred_fallthru
          _
        // Predicated region
        $region25: #{multi_head_self_attention.1} parent=11 // pred_check
          %p196 = pneg %p126
        $region26: #{multi_head_self_attention.1} parent=11 // pred_check_branch
          %198 = sbr.rel (%p196) target = $region28
        $region27: #{multi_head_self_attention.1} parent=11 // pred_region
          _
        $region28: #{multi_head_self_attention.1} parent=11 // pred_fallthru
          _
      $region12: #{multi_head_self_attention.1} parent=5 // pred_fallthru
        _
      %p199 = scmp.lt.s32.totalorder %s16, 2
      // Predicated region
      $region29: #{multi_head_self_attention.1} parent=5 // pred_check
        %p200 = pneg %p199
      $region30: #{multi_head_self_attention.1} parent=5 // pred_check_branch
        %202 = sbr.rel (%p200) target = $region32
      $region31: #{multi_head_self_attention.1} parent=5 // pred_region
        // Predicated region
        $region33: #{multi_head_self_attention.1} parent=31 // pred_check
          %p203 = pneg %p36
        $region34: #{multi_head_self_attention.1} parent=31 // pred_check_branch
          %205 = sbr.rel (%p203) target = $region36
        $region35: #{multi_head_self_attention.1} parent=31 // pred_region
          %p206 = scmp.lt.s32.totalorder %s16, 1
          %s207 = scalar_select %p206, %s16, 1
          %s208 = smul.addr %s207, 2
          %s209 = smul.addr %s208, 4
          %s210 = scalar_lea.vmem %s0, %s209
        $region36: #{multi_head_self_attention.1} parent=31 // pred_fallthru
          _
      $region32: #{multi_head_self_attention.1} parent=5 // pred_fallthru
        _
      %p211 = scmp.le.s32.totalorder 1, %s16
      %p212 = scmp.lt.s32.totalorder %s16, 3
      %p213 = pnand %p211, %p212
      %p214 = pneg %p213
      // Predicated region
      $region37: #{multi_head_self_attention.1} parent=5 // pred_check
        _
      $region38: #{multi_head_self_attention.1} parent=5 // pred_check_branch
        %216 = sbr.rel (%p213) target = $region40
      $region39: #{multi_head_self_attention.1} parent=5 // pred_region
        %s217 = ssub.s32 %s16, 1
        // Predicated region
        $region41: #{multi_head_self_attention.1} parent=39 // pred_check
          %p218 = pneg %p63
        $region42: #{multi_head_self_attention.1} parent=39 // pred_check_branch
          %220 = sbr.rel (%p218) target = $region44
        $region43: #{multi_head_self_attention.1} parent=39 // pred_region
          %221 = dma.done [#allocation3], 3072
        $region44: #{multi_head_self_attention.1} parent=39 // pred_fallthru
          _
        // Predicated region
        $region45: #{multi_head_self_attention.1} parent=39 // pred_check
          %p222 = pneg %p105
        $region46: #{multi_head_self_attention.1} parent=39 // pred_check_branch
          %224 = sbr.rel (%p222) target = $region48
        $region47: #{multi_head_self_attention.1} parent=39 // pred_region
          %225 = dma.done [#allocation6], 1024
        $region48: #{multi_head_self_attention.1} parent=39 // pred_fallthru
          _
        %p226 = scmp.lt.s32.totalorder %s21, 1
        %s227 = scalar_select %p226, %s21, 1
        %s228 = smul.addr %s227, 2
        %s229 = smul.addr %s228, 4
        %s230 = scalar_lea.vmem %s0, %s229
        %p231 = pneg %p42
        %p232 = pneg %p39
        %p233 = pneg %p63
        %p234 = pneg %p60
        %p235 = pneg %p84
        %p236 = pneg %p81
        %p237 = pneg %p105
        %p238 = pneg %p102
        %p239 = pneg %p126
        %p240 = pneg %p123
        %p241 = pneg %p152
        %p242 = pneg %p149
        %s243 = sand.u32 %s139, 1
        %s244 = scalar_lea.sflag [#allocation4], %s243
        %s245 = sand.u32 %s139, 1
        %s246 = smul.addr %s245, 16
        %s247 = scalar_lea.vmem [#allocation7], %s246
        %p248 = scmp.lt.s32.totalorder %s21, 1
        %s249 = scalar_select %p248, %s21, 1
        %s250 = smul.addr %s249, 2
        %s251 = smul.addr %s250, 4
        %s252 = scalar_lea.vmem %s0, %s251
        %v254 = vld [vmem:[%s252] sm:$0xf]
        %v255 = vld [vmem:[%s252 + $0x4] sm:$0xf]
        %v256 = vld [vmem:[#allocation2] sm:$0xff]
        %v257 = vld [vmem:[#allocation2 + $0x8] sm:$0xf]
        %v258 = vld [vmem:[#allocation2 + $0xc] sm:$0xff]
        %v259 = vld [vmem:[#allocation2 + $0x14] sm:$0xf]
        %v260 = vld [vmem:[#allocation2 + $0x18] sm:$0xff]
        %v261 = vld [vmem:[#allocation2 + $0x20] sm:$0xf]
        %v262 = vld [vmem:[#allocation2 + $0x24] sm:$0xff]
        %v263 = vld [vmem:[#allocation2 + $0x2c] sm:$0xf]
        %v264 = vld [vmem:[#allocation2 + $0x30] sm:$0xff]
        %v265 = vld [vmem:[#allocation2 + $0x38] sm:$0xf]
        %v266 = vld [vmem:[#allocation2 + $0x3c] sm:$0xff]
        %v267 = vld [vmem:[#allocation2 + $0x44] sm:$0xf]
        %v268 = vld [vmem:[#allocation2 + $0x48] sm:$0xff]
        %v269 = vld [vmem:[#allocation2 + $0x50] sm:$0xf]
        %v270 = vld [vmem:[#allocation2 + $0x54] sm:$0xff]
        %v271 = vld [vmem:[#allocation2 + $0x5c] sm:$0xf]
        %v272 = vld [vmem:[#allocation2 + $0x60] sm:$0xff]
        %v273 = vld [vmem:[#allocation2 + $0x68] sm:$0xf]
        %v274 = vld [vmem:[#allocation2 + $0x6c] sm:$0xff]
        %v275 = vld [vmem:[#allocation2 + $0x74] sm:$0xf]
        %v276 = vld [vmem:[#allocation2 + $0x78] sm:$0xff]
        %v277 = vld [vmem:[#allocation2 + $0x80] sm:$0xf]
        %v278 = vld [vmem:[#allocation2 + $0x84] sm:$0xff]
        %v279 = vld [vmem:[#allocation2 + $0x8c] sm:$0xf]
        %v280 = vld [vmem:[#allocation2 + $0x90] sm:$0xff]
        %v281 = vld [vmem:[#allocation2 + $0x98] sm:$0xf]
        %v282 = vld [vmem:[#allocation2 + $0x9c] sm:$0xff]
        %v283 = vld [vmem:[#allocation2 + $0xa4] sm:$0xf]
        %v284 = vld [vmem:[#allocation2 + $0xa8] sm:$0xff]
        %v285 = vld [vmem:[#allocation2 + $0xb0] sm:$0xf]
        %v286 = vld [vmem:[#allocation2 + $0xb4] sm:$0xff]
        %v287 = vld [vmem:[#allocation2 + $0xbc] sm:$0xf]
        %v288 = vld [vmem:[%s2] sm:$0x7]
        %v290 = vlaneseq
        %v291 = vshrl.u32 %v290, 7
        %v292 = vsub.s32 0, %v291
        %v293 = vrot.slane %v288, %v292
        %v294 = vlaneseq
        %v295 = vshrl.u32 %v294, 7
        %v296 = vsub.s32 1, %v295
        %v297 = vrot.slane %v288, %v296
        %v298 = vlaneseq
        %v299 = vshrl.u32 %v298, 7
        %v300 = vsub.s32 2, %v299
        %v301 = vrot.slane %v288, %v300
        %v307 = vunpack.c.l.b16 %v254
        %v308 = vunpack.c.l.b16 %v255
        %v309 = vpack.c.b16 %v308, %v307
        %v343 = vunpack.c.l.b16 %v256
        %v344 = vunpack.c.h.b16 %v256
        %v345 = vunpack.c.l.b16 %v257
        %v346 = vunpack.c.l.b16 %v258
        %v347 = vunpack.c.h.b16 %v258
        %v348 = vunpack.c.l.b16 %v259
        %v349 = vunpack.c.l.b16 %v260
        %v350 = vunpack.c.h.b16 %v260
        %v351 = vunpack.c.l.b16 %v261
        %v352 = vunpack.c.l.b16 %v262
        %v353 = vunpack.c.h.b16 %v262
        %v354 = vunpack.c.l.b16 %v263
        %v355 = vunpack.c.l.b16 %v264
        %v356 = vunpack.c.h.b16 %v264
        %v357 = vunpack.c.l.b16 %v265
        %v358 = vunpack.c.l.b16 %v266
        %v359 = vunpack.c.h.b16 %v266
        %v360 = vunpack.c.l.b16 %v267
        %v361 = vunpack.c.l.b16 %v268
        %v362 = vunpack.c.h.b16 %v268
        %v363 = vunpack.c.l.b16 %v269
        %v364 = vunpack.c.l.b16 %v270
        %v365 = vunpack.c.h.b16 %v270
        %v366 = vunpack.c.l.b16 %v271
        %v367 = vunpack.c.l.b16 %v272
        %v368 = vunpack.c.h.b16 %v272
        %v369 = vunpack.c.l.b16 %v273
        %v370 = vunpack.c.l.b16 %v274
        %v371 = vunpack.c.h.b16 %v274
        %v372 = vunpack.c.l.b16 %v275
        %v373 = vunpack.c.l.b16 %v276
        %v374 = vunpack.c.h.b16 %v276
        %v375 = vunpack.c.l.b16 %v277
        %v376 = vunpack.c.l.b16 %v278
        %v377 = vunpack.c.h.b16 %v278
        %v378 = vunpack.c.l.b16 %v279
        %v379 = vunpack.c.l.b16 %v280
        %v380 = vunpack.c.h.b16 %v280
        %v381 = vunpack.c.l.b16 %v281
        %v382 = vunpack.c.l.b16 %v282
        %v383 = vunpack.c.h.b16 %v282
        %v384 = vunpack.c.l.b16 %v283
        %v385 = vunpack.c.l.b16 %v284
        %v386 = vunpack.c.h.b16 %v284
        %v387 = vunpack.c.l.b16 %v285
        %v388 = vunpack.c.l.b16 %v286
        %v389 = vunpack.c.h.b16 %v286
        %v390 = vunpack.c.l.b16 %v287
        %v391 = vpack.c.b16 %v346, %v343
        %v392 = vpack.c.b16 %v347, %v344
        %v393 = vpack.c.b16 %v348, %v345
        %v394 = vpack.c.b16 %v352, %v349
        %v395 = vpack.c.b16 %v353, %v350
        %v396 = vpack.c.b16 %v354, %v351
        %v397 = vpack.c.b16 %v358, %v355
        %v398 = vpack.c.b16 %v359, %v356
        %v399 = vpack.c.b16 %v360, %v357
        %v400 = vpack.c.b16 %v364, %v361
        %v401 = vpack.c.b16 %v365, %v362
        %v402 = vpack.c.b16 %v366, %v363
        %v403 = vpack.c.b16 %v370, %v367
        %v404 = vpack.c.b16 %v371, %v368
        %v405 = vpack.c.b16 %v372, %v369
        %v406 = vpack.c.b16 %v376, %v373
        %v407 = vpack.c.b16 %v377, %v374
        %v408 = vpack.c.b16 %v378, %v375
        %v409 = vpack.c.b16 %v382, %v379
        %v410 = vpack.c.b16 %v383, %v380
        %v411 = vpack.c.b16 %v384, %v381
        %v412 = vpack.c.b16 %v388, %v385
        %v413 = vpack.c.b16 %v389, %v386
        %v414 = vpack.c.b16 %v390, %v387
        %439 = vmatprep.subr.bf16.mxu0 %v413
        %440 = vmatpush1.bf16.msra.mxu0 %v412
        %441 = vmatprep.subr.bf16.mxu0 %v410
        %442 = vmatpush1.bf16.msra.mxu0 %v409
        %443 = vmatprep.subr.bf16.mxu0 %v407
        %444 = vmatpush1.bf16.msra.mxu0 %v406
        %445 = vmatprep.subr.bf16.mxu0 %v404
        %446 = vmatpush1.bf16.msra.mxu0 %v403
        %447 = vmatprep.subr.bf16.mxu0 %v401
        %448 = vmatpush1.bf16.msra.mxu0 %v400
        %449 = vmatprep.subr.bf16.mxu0 %v398
        %450 = vmatpush1.bf16.msra.mxu0 %v397
        %451 = vmatprep.subr.bf16.mxu0 %v395
        %452 = vmatpush1.bf16.msra.mxu0 %v394
        %453 = vmatprep.subr.bf16.mxu0 %v392
        %454 = vmatpush1.bf16.msra.mxu0 %v391
        %455 = vmatprep.subr.bf16.mxu0 0
        %456 = vmatpush2.bf16.msra.mxu0 0
        %457 = vmatprep.subr.bf16.mxu0 0
        %458 = vmatpush2.bf16.msra.mxu0 0
        %459 = vmatprep.subr.bf16.mxu0 0
        %460 = vmatpush2.bf16.msra.mxu0 0
        %461 = vmatprep.subr.bf16.mxu0 0
        %462 = vmatpush2.bf16.msra.mxu0 0
        %463 = vmatprep.subr.bf16.mxu0 0
        %464 = vmatpush2.bf16.msra.mxu0 0
        %465 = vmatprep.subr.bf16.mxu0 0
        %466 = vmatpush2.bf16.msra.mxu0 0
        %467 = vmatprep.subr.bf16.mxu0 0
        %468 = vmatpush2.bf16.msra.mxu0 0
        %469 = vmatprep.subr.bf16.mxu0 0
        %470 = vmatpush2.bf16.msra.mxu0 0
        %471 = vmatprep.mubr.bf16.mxu0 0
        %472 = vmatmul.mubr.bf16.gmra.mxu0 %v309
        %v473 = vpop.f32.mrf.mxu0
        %v474 = vadd.f32 %v293, %v473
        %v475 = vpop.f32.mrf.mxu0
        %v476 = vadd.f32 %v297, %v475
        %v477 = vpop.f32.mrf.mxu0
        %v478 = vadd.f32 %v293, %v477
        %v479 = vpop.f32.mrf.mxu0
        %v480 = vadd.f32 %v297, %v479
        %481 = vdwg.mxu0
        %482 = vmatprep.subr.bf16.mxu0 0
        %483 = vmatpush1.bf16.msra.mxu0 %v414
        %484 = vmatprep.subr.bf16.mxu0 0
        %485 = vmatpush1.bf16.msra.mxu0 %v411
        %486 = vmatprep.subr.bf16.mxu0 0
        %487 = vmatpush1.bf16.msra.mxu0 %v408
        %488 = vmatprep.subr.bf16.mxu0 0
        %489 = vmatpush1.bf16.msra.mxu0 %v405
        %490 = vmatprep.subr.bf16.mxu0 0
        %491 = vmatpush1.bf16.msra.mxu0 %v402
        %492 = vmatprep.subr.bf16.mxu0 0
        %493 = vmatpush1.bf16.msra.mxu0 %v399
        %494 = vmatprep.subr.bf16.mxu0 0
        %495 = vmatpush1.bf16.msra.mxu0 %v396
        %496 = vmatprep.subr.bf16.mxu0 0
        %497 = vmatpush1.bf16.msra.mxu0 %v393
        %498 = vmatprep.subr.bf16.mxu0 0
        %499 = vmatpush2.bf16.msra.mxu0 0
        %500 = vmatprep.subr.bf16.mxu0 0
        %501 = vmatpush2.bf16.msra.mxu0 0
        %502 = vmatprep.subr.bf16.mxu0 0
        %503 = vmatpush2.bf16.msra.mxu0 0
        %504 = vmatprep.subr.bf16.mxu0 0
        %505 = vmatpush2.bf16.msra.mxu0 0
        %506 = vmatprep.subr.bf16.mxu0 0
        %507 = vmatpush2.bf16.msra.mxu0 0
        %508 = vmatprep.subr.bf16.mxu0 0
        %509 = vmatpush2.bf16.msra.mxu0 0
        %510 = vmatprep.subr.bf16.mxu0 0
        %511 = vmatpush2.bf16.msra.mxu0 0
        %512 = vmatprep.subr.bf16.mxu0 0
        %513 = vmatpush2.bf16.msra.mxu0 0
        %514 = vmatprep.mubr.bf16.mxu0 0
        %515 = vmatmul.mubr.bf16.gmra.mxu0 %v309
        %v516 = vpop.f32.mrf.mxu0
        %v517 = vadd.f32 %v301, %v516
        %v518 = vpop.f32.mrf.mxu0
        %v519 = vpop.f32.mrf.mxu0
        %v520 = vadd.f32 %v301, %v519
        %v521 = vpop.f32.mrf.mxu0
        %522 = vdwg.mxu0
        %v523 = vpack.c.bf16 %v478, %v474
        %v524 = vpack.c.bf16 %v480, %v476
        %v525 = vpack.c.bf16 %v520, %v517
        %vm526 = vcmask 261120
        %v528 = vsel %vm526, %v523, 0
        %v531 = vsel %vm526, %v524, 0
        %533 = vmatprep.subr.bf16.mxu0 0
        %534 = vmatpush1.bf16.xpose.msra.mxu0 0
        %535 = vmatprep.subr.bf16.mxu0 0
        %536 = vmatpush1.bf16.xpose.msra.mxu0 0
        %537 = vmatprep.subr.bf16.mxu0 0
        %538 = vmatpush1.bf16.xpose.msra.mxu0 0
        %539 = vmatprep.subr.bf16.mxu0 0
        %540 = vmatpush1.bf16.xpose.msra.mxu0 0
        %541 = vmatprep.subr.bf16.mxu0 0
        %542 = vmatpush1.bf16.xpose.msra.mxu0 0
        %543 = vmatprep.subr.bf16.mxu0 0
        %544 = vmatpush1.bf16.xpose.msra.mxu0 0
        %545 = vmatprep.subr.bf16.mxu0 0
        %546 = vmatpush1.bf16.xpose.msra.mxu0 0
        %547 = vmatprep.subr.bf16.mxu0 0
        %548 = vmatpush1.bf16.xpose.msra.mxu0 %v531
        %549 = vmatprep.subr.bf16.mxu0 0
        %550 = vmatpush2.bf16.xpose.msra.mxu0 0
        %551 = vmatprep.subr.bf16.mxu0 0
        %552 = vmatpush2.bf16.xpose.msra.mxu0 0
        %553 = vmatprep.subr.bf16.mxu0 0
        %554 = vmatpush2.bf16.xpose.msra.mxu0 0
        %555 = vmatprep.subr.bf16.mxu0 0
        %556 = vmatpush2.bf16.xpose.msra.mxu0 0
        %557 = vmatprep.subr.bf16.mxu0 0
        %558 = vmatpush2.bf16.xpose.msra.mxu0 0
        %559 = vmatprep.subr.bf16.mxu0 0
        %560 = vmatpush2.bf16.xpose.msra.mxu0 0
        %561 = vmatprep.subr.bf16.mxu0 0
        %562 = vmatpush2.bf16.xpose.msra.mxu0 0
        %563 = vmatprep.subr.bf16.mxu0 0
        %564 = vmatpush2.bf16.xpose.msra.mxu0 0
        %565 = vmatprep.mubr.bf16.mxu0 0
        %566 = vmatmul.mubr.bf16.gmra.mxu0 %v528
        %v567 = vpop.f32.mrf.mxu0
        %v568 = vadd.f32 0.0, %v567
        %v569 = vpop.f32.mrf.mxu0
        %v570 = vpop.f32.mrf.mxu0
        %v571 = vadd.f32 0.0, %v570
        %v572 = vpop.f32.mrf.mxu0
        %573 = vdwg.mxu0
        %vm574 = vcmask 130048
        %v575 = vsel %vm574, %v568, -inf
        %576 = vmax.xlane.f32.xlu0 %v575
        %v577 = vpop.xlane.xlu0 %576
        %v578 = vsel %vm574, %v571, -inf
        %579 = vmax.xlane.f32.xlu0 %v578
        %v580 = vpop.xlane.xlu0 %579
        %v581 = vsub.f32 %v568, %v577
        %v582 = vsub.f32 %v571, %v580
        %v583 = vmul.f32 %v581, 1.442695
        %v584 = vpow.pop %v583
        %v585 = vmul.f32 %v582, 1.442695
        %v586 = vpow.pop %v585
        %v587 = vsel %vm574, %v584, 0.0
        %588 = vadd.xlane.f32.xlu0 %v587
        %v589 = vpop.xlane.xlu0 %588
        %v590 = vsel %vm574, %v586, 0.0
        %591 = vadd.xlane.f32.xlu0 %v590
        %v592 = vpop.xlane.xlu0 %591
        %v593 = vrcp.pop %v589
        %v594 = vrcp.pop %v592
        %v595 = vmul.f32 %v584, %v593
        %v596 = vmul.f32 %v586, %v594
        %v597 = vpack.c.bf16 %v596, %v595
        %v599 = vsel %vm574, %v597, 0
        %601 = vmatprep.subr.bf16.mxu0 0
        %602 = vmatpush1.bf16.msra.mxu0 0
        %603 = vmatprep.subr.bf16.mxu0 0
        %604 = vmatpush1.bf16.msra.mxu0 0
        %605 = vmatprep.subr.bf16.mxu0 0
        %606 = vmatpush1.bf16.msra.mxu0 0
        %607 = vmatprep.subr.bf16.mxu0 0
        %608 = vmatpush1.bf16.msra.mxu0 0
        %609 = vmatprep.subr.bf16.mxu0 0
        %610 = vmatpush1.bf16.msra.mxu0 0
        %611 = vmatprep.subr.bf16.mxu0 0
        %612 = vmatpush1.bf16.msra.mxu0 0
        %613 = vmatprep.subr.bf16.mxu0 0
        %614 = vmatpush1.bf16.msra.mxu0 0
        %615 = vmatprep.subr.bf16.mxu0 0
        %616 = vmatpush1.bf16.msra.mxu0 %v525
        %617 = vmatprep.subr.bf16.mxu0 0
        %618 = vmatpush2.bf16.msra.mxu0 0
        %619 = vmatprep.subr.bf16.mxu0 0
        %620 = vmatpush2.bf16.msra.mxu0 0
        %621 = vmatprep.subr.bf16.mxu0 0
        %622 = vmatpush2.bf16.msra.mxu0 0
        %623 = vmatprep.subr.bf16.mxu0 0
        %624 = vmatpush2.bf16.msra.mxu0 0
        %625 = vmatprep.subr.bf16.mxu0 0
        %626 = vmatpush2.bf16.msra.mxu0 0
        %627 = vmatprep.subr.bf16.mxu0 0
        %628 = vmatpush2.bf16.msra.mxu0 0
        %629 = vmatprep.subr.bf16.mxu0 0
        %630 = vmatpush2.bf16.msra.mxu0 0
        %631 = vmatprep.subr.bf16.mxu0 0
        %632 = vmatpush2.bf16.msra.mxu0 0
        %633 = vmatprep.mubr.bf16.mxu0 0
        %634 = vmatmul.mubr.bf16.gmra.mxu0 %v599
        %v635 = vpop.f32.mrf.mxu0
        %v636 = vadd.f32 0.0, %v635
        %v637 = vpop.f32.mrf.mxu0
        %v638 = vpop.f32.mrf.mxu0
        %v639 = vadd.f32 0.0, %v638
        %v640 = vpop.f32.mrf.mxu0
        %641 = vdwg.mxu0
        %v642 = vpack.c.bf16 %v639, %v636
        %644 = vrot.lane.b32.xlu0 %v523, 96
        %v645 = vpop.permute.xlu0 %644
        %647 = vrot.lane.b32.xlu0 %v524, 96
        %v648 = vpop.permute.xlu0 %647
        %v650 = vsel %vm526, %v645, 0
        %v653 = vsel %vm526, %v648, 0
        %655 = vmatprep.subr.bf16.mxu0 0
        %656 = vmatpush1.bf16.xpose.msra.mxu0 0
        %657 = vmatprep.subr.bf16.mxu0 0
        %658 = vmatpush1.bf16.xpose.msra.mxu0 0
        %659 = vmatprep.subr.bf16.mxu0 0
        %660 = vmatpush1.bf16.xpose.msra.mxu0 0
        %661 = vmatprep.subr.bf16.mxu0 0
        %662 = vmatpush1.bf16.xpose.msra.mxu0 0
        %663 = vmatprep.subr.bf16.mxu0 0
        %664 = vmatpush1.bf16.xpose.msra.mxu0 0
        %665 = vmatprep.subr.bf16.mxu0 0
        %666 = vmatpush1.bf16.xpose.msra.mxu0 0
        %667 = vmatprep.subr.bf16.mxu0 0
        %668 = vmatpush1.bf16.xpose.msra.mxu0 0
        %669 = vmatprep.subr.bf16.mxu0 0
        %670 = vmatpush1.bf16.xpose.msra.mxu0 %v653
        %671 = vmatprep.subr.bf16.mxu0 0
        %672 = vmatpush2.bf16.xpose.msra.mxu0 0
        %673 = vmatprep.subr.bf16.mxu0 0
        %674 = vmatpush2.bf16.xpose.msra.mxu0 0
        %675 = vmatprep.subr.bf16.mxu0 0
        %676 = vmatpush2.bf16.xpose.msra.mxu0 0
        %677 = vmatprep.subr.bf16.mxu0 0
        %678 = vmatpush2.bf16.xpose.msra.mxu0 0
        %679 = vmatprep.subr.bf16.mxu0 0
        %680 = vmatpush2.bf16.xpose.msra.mxu0 0
        %681 = vmatprep.subr.bf16.mxu0 0
        %682 = vmatpush2.bf16.xpose.msra.mxu0 0
        %683 = vmatprep.subr.bf16.mxu0 0
        %684 = vmatpush2.bf16.xpose.msra.mxu0 0
        %685 = vmatprep.subr.bf16.mxu0 0
        %686 = vmatpush2.bf16.xpose.msra.mxu0 0
        %687 = vmatprep.mubr.bf16.mxu0 0
        %688 = vmatmul.mubr.bf16.gmra.mxu0 %v650
        %v689 = vpop.f32.mrf.mxu0
        %v690 = vadd.f32 0.0, %v689
        %v691 = vpop.f32.mrf.mxu0
        %v692 = vpop.f32.mrf.mxu0
        %v693 = vadd.f32 0.0, %v692
        %v694 = vpop.f32.mrf.mxu0
        %695 = vdwg.mxu0
        %v696 = vsel %vm574, %v690, -inf
        %697 = vmax.xlane.f32.xlu0 %v696
        %v698 = vpop.xlane.xlu0 %697
        %v699 = vsel %vm574, %v693, -inf
        %700 = vmax.xlane.f32.xlu0 %v699
        %v701 = vpop.xlane.xlu0 %700
        %v702 = vsub.f32 %v690, %v698
        %v703 = vsub.f32 %v693, %v701
        %v704 = vmul.f32 %v702, 1.442695
        %v705 = vpow.pop %v704
        %v706 = vmul.f32 %v703, 1.442695
        %v707 = vpow.pop %v706
        %v708 = vsel %vm574, %v705, 0.0
        %709 = vadd.xlane.f32.xlu0 %v708
        %v710 = vpop.xlane.xlu0 %709
        %v711 = vsel %vm574, %v707, 0.0
        %712 = vadd.xlane.f32.xlu0 %v711
        %v713 = vpop.xlane.xlu0 %712
        %v714 = vrcp.pop %v710
        %v715 = vrcp.pop %v713
        %v716 = vmul.f32 %v705, %v714
        %v717 = vmul.f32 %v707, %v715
        %v718 = vpack.c.bf16 %v717, %v716
        %720 = vrot.lane.b32.xlu0 %v525, 96
        %v721 = vpop.permute.xlu0 %720
        %v724 = vsel %vm574, %v718, 0
        %726 = vmatprep.subr.bf16.mxu0 0
        %727 = vmatpush1.bf16.msra.mxu0 0
        %728 = vmatprep.subr.bf16.mxu0 0
        %729 = vmatpush1.bf16.msra.mxu0 0
        %730 = vmatprep.subr.bf16.mxu0 0
        %731 = vmatpush1.bf16.msra.mxu0 0
        %732 = vmatprep.subr.bf16.mxu0 0
        %733 = vmatpush1.bf16.msra.mxu0 0
        %734 = vmatprep.subr.bf16.mxu0 0
        %735 = vmatpush1.bf16.msra.mxu0 0
        %736 = vmatprep.subr.bf16.mxu0 0
        %737 = vmatpush1.bf16.msra.mxu0 0
        %738 = vmatprep.subr.bf16.mxu0 0
        %739 = vmatpush1.bf16.msra.mxu0 0
        %740 = vmatprep.subr.bf16.mxu0 0
        %741 = vmatpush1.bf16.msra.mxu0 %v721
        %742 = vmatprep.subr.bf16.mxu0 0
        %743 = vmatpush2.bf16.msra.mxu0 0
        %744 = vmatprep.subr.bf16.mxu0 0
        %745 = vmatpush2.bf16.msra.mxu0 0
        %746 = vmatprep.subr.bf16.mxu0 0
        %747 = vmatpush2.bf16.msra.mxu0 0
        %748 = vmatprep.subr.bf16.mxu0 0
        %749 = vmatpush2.bf16.msra.mxu0 0
        %750 = vmatprep.subr.bf16.mxu0 0
        %751 = vmatpush2.bf16.msra.mxu0 0
        %752 = vmatprep.subr.bf16.mxu0 0
        %753 = vmatpush2.bf16.msra.mxu0 0
        %754 = vmatprep.subr.bf16.mxu0 0
        %755 = vmatpush2.bf16.msra.mxu0 0
        %756 = vmatprep.subr.bf16.mxu0 0
        %757 = vmatpush2.bf16.msra.mxu0 0
        %758 = vmatprep.mubr.bf16.mxu0 0
        %759 = vmatmul.mubr.bf16.gmra.mxu0 %v724
        %v760 = vpop.f32.mrf.mxu0
        %v761 = vadd.f32 0.0, %v760
        %v762 = vpop.f32.mrf.mxu0
        %v763 = vpop.f32.mrf.mxu0
        %v764 = vadd.f32 0.0, %v763
        %v765 = vpop.f32.mrf.mxu0
        %766 = vdwg.mxu0
        %v767 = vpack.c.bf16 %v764, %v761
        %768 = vrot.lane.b32.xlu0 %v523, 64
        %v769 = vpop.permute.xlu0 %768
        %770 = vrot.lane.b32.xlu0 %v524, 64
        %v771 = vpop.permute.xlu0 %770
        %v773 = vsel %vm526, %v769, 0
        %v776 = vsel %vm526, %v771, 0
        %778 = vmatprep.subr.bf16.mxu0 0
        %779 = vmatpush1.bf16.xpose.msra.mxu0 0
        %780 = vmatprep.subr.bf16.mxu0 0
        %781 = vmatpush1.bf16.xpose.msra.mxu0 0
        %782 = vmatprep.subr.bf16.mxu0 0
        %783 = vmatpush1.bf16.xpose.msra.mxu0 0
        %784 = vmatprep.subr.bf16.mxu0 0
        %785 = vmatpush1.bf16.xpose.msra.mxu0 0
        %786 = vmatprep.subr.bf16.mxu0 0
        %787 = vmatpush1.bf16.xpose.msra.mxu0 0
        %788 = vmatprep.subr.bf16.mxu0 0
        %789 = vmatpush1.bf16.xpose.msra.mxu0 0
        %790 = vmatprep.subr.bf16.mxu0 0
        %791 = vmatpush1.bf16.xpose.msra.mxu0 0
        %792 = vmatprep.subr.bf16.mxu0 0
        %793 = vmatpush1.bf16.xpose.msra.mxu0 %v776
        %794 = vmatprep.subr.bf16.mxu0 0
        %795 = vmatpush2.bf16.xpose.msra.mxu0 0
        %796 = vmatprep.subr.bf16.mxu0 0
        %797 = vmatpush2.bf16.xpose.msra.mxu0 0
        %798 = vmatprep.subr.bf16.mxu0 0
        %799 = vmatpush2.bf16.xpose.msra.mxu0 0
        %800 = vmatprep.subr.bf16.mxu0 0
        %801 = vmatpush2.bf16.xpose.msra.mxu0 0
        %802 = vmatprep.subr.bf16.mxu0 0
        %803 = vmatpush2.bf16.xpose.msra.mxu0 0
        %804 = vmatprep.subr.bf16.mxu0 0
        %805 = vmatpush2.bf16.xpose.msra.mxu0 0
        %806 = vmatprep.subr.bf16.mxu0 0
        %807 = vmatpush2.bf16.xpose.msra.mxu0 0
        %808 = vmatprep.subr.bf16.mxu0 0
        %809 = vmatpush2.bf16.xpose.msra.mxu0 0
        %810 = vmatprep.mubr.bf16.mxu0 0
        %811 = vmatmul.mubr.bf16.gmra.mxu0 %v773
        %v812 = vpop.f32.mrf.mxu0
        %v813 = vadd.f32 0.0, %v812
        %v814 = vpop.f32.mrf.mxu0
        %v815 = vpop.f32.mrf.mxu0
        %v816 = vadd.f32 0.0, %v815
        %v817 = vpop.f32.mrf.mxu0
        %818 = vdwg.mxu0
        %v819 = vsel %vm574, %v813, -inf
        %820 = vmax.xlane.f32.xlu0 %v819
        %v821 = vpop.xlane.xlu0 %820
        %v822 = vsel %vm574, %v816, -inf
        %823 = vmax.xlane.f32.xlu0 %v822
        %v824 = vpop.xlane.xlu0 %823
        %v825 = vsub.f32 %v813, %v821
        %v826 = vsub.f32 %v816, %v824
        %v827 = vmul.f32 %v825, 1.442695
        %v828 = vpow.pop %v827
        %v829 = vmul.f32 %v826, 1.442695
        %v830 = vpow.pop %v829
        %v831 = vsel %vm574, %v828, 0.0
        %832 = vadd.xlane.f32.xlu0 %v831
        %v833 = vpop.xlane.xlu0 %832
        %v834 = vsel %vm574, %v830, 0.0
        %835 = vadd.xlane.f32.xlu0 %v834
        %v836 = vpop.xlane.xlu0 %835
        %v837 = vrcp.pop %v833
        %v838 = vrcp.pop %v836
        %v839 = vmul.f32 %v828, %v837
        %v840 = vmul.f32 %v830, %v838
        %v841 = vpack.c.bf16 %v840, %v839
        %842 = vrot.lane.b32.xlu0 %v525, 64
        %v843 = vpop.permute.xlu0 %842
        %v846 = vsel %vm574, %v841, 0
        %848 = vmatprep.subr.bf16.mxu0 0
        %849 = vmatpush1.bf16.msra.mxu0 0
        %850 = vmatprep.subr.bf16.mxu0 0
        %851 = vmatpush1.bf16.msra.mxu0 0
        %852 = vmatprep.subr.bf16.mxu0 0
        %853 = vmatpush1.bf16.msra.mxu0 0
        %854 = vmatprep.subr.bf16.mxu0 0
        %855 = vmatpush1.bf16.msra.mxu0 0
        %856 = vmatprep.subr.bf16.mxu0 0
        %857 = vmatpush1.bf16.msra.mxu0 0
        %858 = vmatprep.subr.bf16.mxu0 0
        %859 = vmatpush1.bf16.msra.mxu0 0
        %860 = vmatprep.subr.bf16.mxu0 0
        %861 = vmatpush1.bf16.msra.mxu0 0
        %862 = vmatprep.subr.bf16.mxu0 0
        %863 = vmatpush1.bf16.msra.mxu0 %v843
        %864 = vmatprep.subr.bf16.mxu0 0
        %865 = vmatpush2.bf16.msra.mxu0 0
        %866 = vmatprep.subr.bf16.mxu0 0
        %867 = vmatpush2.bf16.msra.mxu0 0
        %868 = vmatprep.subr.bf16.mxu0 0
        %869 = vmatpush2.bf16.msra.mxu0 0
        %870 = vmatprep.subr.bf16.mxu0 0
        %871 = vmatpush2.bf16.msra.mxu0 0
        %872 = vmatprep.subr.bf16.mxu0 0
        %873 = vmatpush2.bf16.msra.mxu0 0
        %874 = vmatprep.subr.bf16.mxu0 0
        %875 = vmatpush2.bf16.msra.mxu0 0
        %876 = vmatprep.subr.bf16.mxu0 0
        %877 = vmatpush2.bf16.msra.mxu0 0
        %878 = vmatprep.subr.bf16.mxu0 0
        %879 = vmatpush2.bf16.msra.mxu0 0
        %880 = vmatprep.mubr.bf16.mxu0 0
        %881 = vmatmul.mubr.bf16.gmra.mxu0 %v846
        %v882 = vpop.f32.mrf.mxu0
        %v883 = vadd.f32 0.0, %v882
        %v884 = vpop.f32.mrf.mxu0
        %v885 = vpop.f32.mrf.mxu0
        %v886 = vadd.f32 0.0, %v885
        %v887 = vpop.f32.mrf.mxu0
        %888 = vdwg.mxu0
        %v889 = vpack.c.bf16 %v886, %v883
        %890 = vrot.lane.b32.xlu0 %v523, 32
        %v891 = vpop.permute.xlu0 %890
        %892 = vrot.lane.b32.xlu0 %v524, 32
        %v893 = vpop.permute.xlu0 %892
        %v895 = vsel %vm526, %v891, 0
        %v898 = vsel %vm526, %v893, 0
        %900 = vmatprep.subr.bf16.mxu0 0
        %901 = vmatpush1.bf16.xpose.msra.mxu0 0
        %902 = vmatprep.subr.bf16.mxu0 0
        %903 = vmatpush1.bf16.xpose.msra.mxu0 0
        %904 = vmatprep.subr.bf16.mxu0 0
        %905 = vmatpush1.bf16.xpose.msra.mxu0 0
        %906 = vmatprep.subr.bf16.mxu0 0
        %907 = vmatpush1.bf16.xpose.msra.mxu0 0
        %908 = vmatprep.subr.bf16.mxu0 0
        %909 = vmatpush1.bf16.xpose.msra.mxu0 0
        %910 = vmatprep.subr.bf16.mxu0 0
        %911 = vmatpush1.bf16.xpose.msra.mxu0 0
        %912 = vmatprep.subr.bf16.mxu0 0
        %913 = vmatpush1.bf16.xpose.msra.mxu0 0
        %914 = vmatprep.subr.bf16.mxu0 0
        %915 = vmatpush1.bf16.xpose.msra.mxu0 %v898
        %916 = vmatprep.subr.bf16.mxu0 0
        %917 = vmatpush2.bf16.xpose.msra.mxu0 0
        %918 = vmatprep.subr.bf16.mxu0 0
        %919 = vmatpush2.bf16.xpose.msra.mxu0 0
        %920 = vmatprep.subr.bf16.mxu0 0
        %921 = vmatpush2.bf16.xpose.msra.mxu0 0
        %922 = vmatprep.subr.bf16.mxu0 0
        %923 = vmatpush2.bf16.xpose.msra.mxu0 0
        %924 = vmatprep.subr.bf16.mxu0 0
        %925 = vmatpush2.bf16.xpose.msra.mxu0 0
        %926 = vmatprep.subr.bf16.mxu0 0
        %927 = vmatpush2.bf16.xpose.msra.mxu0 0
        %928 = vmatprep.subr.bf16.mxu0 0
        %929 = vmatpush2.bf16.xpose.msra.mxu0 0
        %930 = vmatprep.subr.bf16.mxu0 0
        %931 = vmatpush2.bf16.xpose.msra.mxu0 0
        %932 = vmatprep.mubr.bf16.mxu0 0
        %933 = vmatmul.mubr.bf16.gmra.mxu0 %v895
        %v934 = vpop.f32.mrf.mxu0
        %v935 = vadd.f32 0.0, %v934
        %v936 = vpop.f32.mrf.mxu0
        %v937 = vpop.f32.mrf.mxu0
        %v938 = vadd.f32 0.0, %v937
        %v939 = vpop.f32.mrf.mxu0
        %940 = vdwg.mxu0
        %v941 = vsel %vm574, %v935, -inf
        %942 = vmax.xlane.f32.xlu0 %v941
        %v943 = vpop.xlane.xlu0 %942
        %v944 = vsel %vm574, %v938, -inf
        %945 = vmax.xlane.f32.xlu0 %v944
        %v946 = vpop.xlane.xlu0 %945
        %v947 = vsub.f32 %v935, %v943
        %v948 = vsub.f32 %v938, %v946
        %v949 = vmul.f32 %v947, 1.442695
        %v950 = vpow.pop %v949
        %v951 = vmul.f32 %v948, 1.442695
        %v952 = vpow.pop %v951
        %v953 = vsel %vm574, %v950, 0.0
        %954 = vadd.xlane.f32.xlu0 %v953
        %v955 = vpop.xlane.xlu0 %954
        %v956 = vsel %vm574, %v952, 0.0
        %957 = vadd.xlane.f32.xlu0 %v956
        %v958 = vpop.xlane.xlu0 %957
        %v959 = vrcp.pop %v955
        %v960 = vrcp.pop %v958
        %v961 = vmul.f32 %v950, %v959
        %v962 = vmul.f32 %v952, %v960
        %v963 = vpack.c.bf16 %v962, %v961
        %964 = vrot.lane.b32.xlu0 %v525, 32
        %v965 = vpop.permute.xlu0 %964
        %v968 = vsel %vm574, %v963, 0
        %970 = vmatprep.subr.bf16.mxu0 0
        %971 = vmatpush1.bf16.msra.mxu0 0
        %972 = vmatprep.subr.bf16.mxu0 0
        %973 = vmatpush1.bf16.msra.mxu0 0
        %974 = vmatprep.subr.bf16.mxu0 0
        %975 = vmatpush1.bf16.msra.mxu0 0
        %976 = vmatprep.subr.bf16.mxu0 0
        %977 = vmatpush1.bf16.msra.mxu0 0
        %978 = vmatprep.subr.bf16.mxu0 0
        %979 = vmatpush1.bf16.msra.mxu0 0
        %980 = vmatprep.subr.bf16.mxu0 0
        %981 = vmatpush1.bf16.msra.mxu0 0
        %982 = vmatprep.subr.bf16.mxu0 0
        %983 = vmatpush1.bf16.msra.mxu0 0
        %984 = vmatprep.subr.bf16.mxu0 0
        %985 = vmatpush1.bf16.msra.mxu0 %v965
        %986 = vmatprep.subr.bf16.mxu0 0
        %987 = vmatpush2.bf16.msra.mxu0 0
        %988 = vmatprep.subr.bf16.mxu0 0
        %989 = vmatpush2.bf16.msra.mxu0 0
        %990 = vmatprep.subr.bf16.mxu0 0
        %991 = vmatpush2.bf16.msra.mxu0 0
        %992 = vmatprep.subr.bf16.mxu0 0
        %993 = vmatpush2.bf16.msra.mxu0 0
        %994 = vmatprep.subr.bf16.mxu0 0
        %995 = vmatpush2.bf16.msra.mxu0 0
        %996 = vmatprep.subr.bf16.mxu0 0
        %997 = vmatpush2.bf16.msra.mxu0 0
        %998 = vmatprep.subr.bf16.mxu0 0
        %999 = vmatpush2.bf16.msra.mxu0 0
        %1000 = vmatprep.subr.bf16.mxu0 0
        %1001 = vmatpush2.bf16.msra.mxu0 0
        %1002 = vmatprep.mubr.bf16.mxu0 0
        %1003 = vmatmul.mubr.bf16.gmra.mxu0 %v968
        %v1004 = vpop.f32.mrf.mxu0
        %v1005 = vadd.f32 0.0, %v1004
        %v1006 = vpop.f32.mrf.mxu0
        %v1007 = vpop.f32.mrf.mxu0
        %v1008 = vadd.f32 0.0, %v1007
        %v1009 = vpop.f32.mrf.mxu0
        %1010 = vdwg.mxu0
        %v1011 = vpack.c.bf16 %v1008, %v1005
        %1013 = vrot.lane.b32.xlu0 %v767, 32
        %v1014 = vpop.permute.xlu0 %1013
        %1016 = vrot.lane.b32.xlu0 %v889, 64
        %v1017 = vpop.permute.xlu0 %1016
        %1019 = vrot.lane.b32.xlu0 %v1011, 96
        %v1020 = vpop.permute.xlu0 %1019
        %v1023 = vsel %vm526, %v642, %v1014
        %vm1024 = vcmask 523264
        %v1026 = vsel %vm1024, %v1023, %v1017
        %vm1027 = vcmask 785408
        %v1029 = vsel %vm1027, %v1026, %v1020
        %v1031 = vld [vmem:[#allocation5] sm:$0xf]
        %v1032 = vld [vmem:[#allocation5 + $0x4] sm:$0xf]
        %v1033 = vld [vmem:[#allocation5 + $0x8] sm:$0xf]
        %v1034 = vld [vmem:[#allocation5 + $0xc] sm:$0xf]
        %v1035 = vld [vmem:[#allocation5 + $0x10] sm:$0xf]
        %v1036 = vld [vmem:[#allocation5 + $0x14] sm:$0xf]
        %v1037 = vld [vmem:[#allocation5 + $0x18] sm:$0xf]
        %v1038 = vld [vmem:[#allocation5 + $0x1c] sm:$0xf]
        %v1039 = vld [vmem:[#allocation5 + $0x20] sm:$0xf]
        %v1040 = vld [vmem:[#allocation5 + $0x24] sm:$0xf]
        %v1041 = vld [vmem:[#allocation5 + $0x28] sm:$0xf]
        %v1042 = vld [vmem:[#allocation5 + $0x2c] sm:$0xf]
        %v1043 = vld [vmem:[#allocation5 + $0x30] sm:$0xf]
        %v1044 = vld [vmem:[#allocation5 + $0x34] sm:$0xf]
        %v1045 = vld [vmem:[#allocation5 + $0x38] sm:$0xf]
        %v1046 = vld [vmem:[#allocation5 + $0x3c] sm:$0xf]
        %v1047 = vld [vmem:[%s4] sm:$0x1]
        %v1049 = vlaneseq
        %v1050 = vshrl.u32 %v1049, 7
        %v1051 = vsub.s32 0, %v1050
        %v1052 = vrot.slane %v1047, %v1051
        %v1070 = vunpack.c.l.b16 %v1031
        %v1071 = vunpack.c.l.b16 %v1032
        %v1072 = vunpack.c.l.b16 %v1033
        %v1073 = vunpack.c.l.b16 %v1034
        %v1074 = vunpack.c.l.b16 %v1035
        %v1075 = vunpack.c.l.b16 %v1036
        %v1076 = vunpack.c.l.b16 %v1037
        %v1077 = vunpack.c.l.b16 %v1038
        %v1078 = vunpack.c.l.b16 %v1039
        %v1079 = vunpack.c.l.b16 %v1040
        %v1080 = vunpack.c.l.b16 %v1041
        %v1081 = vunpack.c.l.b16 %v1042
        %v1082 = vunpack.c.l.b16 %v1043
        %v1083 = vunpack.c.l.b16 %v1044
        %v1084 = vunpack.c.l.b16 %v1045
        %v1085 = vunpack.c.l.b16 %v1046
        %v1086 = vpack.c.b16 %v1071, %v1070
        %v1087 = vpack.c.b16 %v1073, %v1072
        %v1088 = vpack.c.b16 %v1075, %v1074
        %v1089 = vpack.c.b16 %v1077, %v1076
        %v1090 = vpack.c.b16 %v1079, %v1078
        %v1091 = vpack.c.b16 %v1081, %v1080
        %v1092 = vpack.c.b16 %v1083, %v1082
        %v1093 = vpack.c.b16 %v1085, %v1084
        %1102 = vmatprep.subr.bf16.mxu0 0
        %1103 = vmatpush1.bf16.msra.mxu0 %v1093
        %1104 = vmatprep.subr.bf16.mxu0 0
        %1105 = vmatpush1.bf16.msra.mxu0 %v1092
        %1106 = vmatprep.subr.bf16.mxu0 0
        %1107 = vmatpush1.bf16.msra.mxu0 %v1091
        %1108 = vmatprep.subr.bf16.mxu0 0
        %1109 = vmatpush1.bf16.msra.mxu0 %v1090
        %1110 = vmatprep.subr.bf16.mxu0 0
        %1111 = vmatpush1.bf16.msra.mxu0 %v1089
        %1112 = vmatprep.subr.bf16.mxu0 0
        %1113 = vmatpush1.bf16.msra.mxu0 %v1088
        %1114 = vmatprep.subr.bf16.mxu0 0
        %1115 = vmatpush1.bf16.msra.mxu0 %v1087
        %1116 = vmatprep.subr.bf16.mxu0 0
        %1117 = vmatpush1.bf16.msra.mxu0 %v1086
        %1118 = vmatprep.subr.bf16.mxu0 0
        %1119 = vmatpush2.bf16.msra.mxu0 0
        %1120 = vmatprep.subr.bf16.mxu0 0
        %1121 = vmatpush2.bf16.msra.mxu0 0
        %1122 = vmatprep.subr.bf16.mxu0 0
        %1123 = vmatpush2.bf16.msra.mxu0 0
        %1124 = vmatprep.subr.bf16.mxu0 0
        %1125 = vmatpush2.bf16.msra.mxu0 0
        %1126 = vmatprep.subr.bf16.mxu0 0
        %1127 = vmatpush2.bf16.msra.mxu0 0
        %1128 = vmatprep.subr.bf16.mxu0 0
        %1129 = vmatpush2.bf16.msra.mxu0 0
        %1130 = vmatprep.subr.bf16.mxu0 0
        %1131 = vmatpush2.bf16.msra.mxu0 0
        %1132 = vmatprep.subr.bf16.mxu0 0
        %1133 = vmatpush2.bf16.msra.mxu0 0
        %1134 = vmatprep.mubr.bf16.mxu0 0
        %1135 = vmatmul.mubr.bf16.gmra.mxu0 %v1029
        %v1136 = vpop.f32.mrf.mxu0
        %v1137 = vadd.f32 %v1052, %v1136
        %v1138 = vpop.f32.mrf.mxu0
        %v1139 = vpop.f32.mrf.mxu0
        %v1140 = vadd.f32 %v1052, %v1139
        %v1141 = vpop.f32.mrf.mxu0
        %1142 = vdwg.mxu0
        %1143 = vst [vmem:[%s247] sm:$0xff] %v1137
        %1144 = vst [vmem:[%s247 + $0x8] sm:$0xff] %v1140
        %s1145 = sand.u32 %s139, 1
        %s1146 = scalar_lea.sflag [#allocation4], %s1145
        %s1147 = sand.u32 %s139, 1
        %s1148 = smul.addr %s1147, 16
        %s1149 = scalar_lea.vmem [#allocation7], %s1148
        // Predicated region
        $region49: #{multi_head_self_attention.1} parent=39 // pred_check
          %p1150 = pneg %p149
        $region50: #{multi_head_self_attention.1} parent=39 // pred_check_branch
          %1152 = sbr.rel (%p1150) target = $region52
        $region51: #{multi_head_self_attention.1} parent=39 // pred_region
          %s1154 = ssub.s32 256, 256
          %1155 = vsyncadd %s1146, %s1154
          %s1156 = smul.addr %s21, 2
          %s1157 = smul.addr %s1156, 128
          %s1158 = scalar_lea.hbm %s5, %s1157
          %s1159 = sshll.u32 %s1149, 4
          %s1160 = int_to_ptr.vmem [resolvable:$true] %s1159
          %1165 = dma.vmem_to_hbm [thread:$0]  %s1160, 256, %s1158, %s1146, 128, 128, 8
        $region52: #{multi_head_self_attention.1} parent=39 // pred_fallthru
          _
      $region40: #{multi_head_self_attention.1} parent=5 // pred_fallthru
        _
      %p1166 = scmp.le.s32.totalorder 2, %s16
      // Predicated region
      $region53: #{multi_head_self_attention.1} parent=5 // pred_check
        %p1167 = pneg %p1166
      $region54: #{multi_head_self_attention.1} parent=5 // pred_check_branch
        %1169 = sbr.rel (%p1167) target = $region56
      $region55: #{multi_head_self_attention.1} parent=5 // pred_region
        %s1170 = ssub.s32 %s16, 2
        // Predicated region
        $region57: #{multi_head_self_attention.1} parent=55 // pred_check
          %p1171 = pneg %p155
        $region58: #{multi_head_self_attention.1} parent=55 // pred_check_branch
          %1173 = sbr.rel (%p1171) target = $region60
        $region59: #{multi_head_self_attention.1} parent=55 // pred_region
          %s1174 = sand.u32 %s140, 1
          %s1175 = scalar_lea.sflag [#allocation4], %s1174
          %s1176 = sand.u32 %s140, 1
          %s1177 = smul.addr %s1176, 16
          %s1178 = scalar_lea.vmem [#allocation7], %s1177
          %1179 = dma.done %s1175, 256
        $region60: #{multi_head_self_attention.1} parent=55 // pred_fallthru
          _
      $region56: #{multi_head_self_attention.1} parent=5 // pred_fallthru
        _
    $region6: #{multi_head_self_attention.1} parent=1 // loop_footer
      %s20 = sadd.s32 1, %s16
    $region7: #{multi_head_self_attention.1} parent=1 // loop_footer_branch
      %15 = sbr.rel target = $region3
    $region8: #{multi_head_self_attention.1} parent=1 // loop_exit
      _
    %1180 = vsyncpa [#allocation3], 1
    %s1181 = scalar_lea.sflag [#allocation3], 1
    %1182 = vsyncpa %s1181, 1
    %1183 = vsyncpa [#allocation6], 1
    %1184 = vsyncpa [#allocation4], 1
    %s1185 = scalar_lea.sflag [#allocation4], 1
    %1186 = vsyncpa %s1185, 1

</llo_original>
